<compile_context>
chip_gen: v7x
topology: tpu7x:2x2x1
jax: 0.10.0
libtpu: 0.0.40
codegen_flags: <defaults>
</compile_context>

<pallas_src>
import functools

import jax
import jax.numpy as jnp
from jax.experimental import pallas as pl
from jax.experimental.pallas import tpu as pltpu

_CPAD = 128            # lane-dense classifier output width
_NEG_BIG = -1.0e30     # bias value for padded logit lanes (excluded by softmax)


def _round_up(x, m):
    return ((x + m - 1) // m) * m


def _pick_tiles(B, S, E, itemsize, tile_bytes_budget=4 * 1024 * 1024):
    """Pick (TB, TS): TB multiple of 8, >=2 batch tiles when B allows (v7x
    megacore), TS multiple of 8 sized so one hidden tile is ~<=4 MiB (x2 for
    double buffering still fits the scoped-VMEM budget on every generation)."""
    b8 = _round_up(B, 8)
    if b8 > 8:
        tb = min(128, _round_up((b8 + 1) // 2, 8))
    else:
        tb = b8
    ts = max(8, tile_bytes_budget // (tb * E * itemsize))
    ts = min(_round_up(S, 8), _round_up(ts, 8))
    return tb, ts


def _discriminator_kernel(h_ref, w_ref, b_ref, out_ref, acc_ref, *, inv_seq_len):
    """Grid = (batch_tiles, seq_tiles); seq axis is the reduction (last).

    h_ref   : [TB, TS, E]  streamed hidden-state tile (f32 or bf16)
    w_ref   : [E, CPAD]    classifier weight, zero-padded on lanes
    b_ref   : [1, CPAD]    classifier bias, -1e30 on padded lanes
    out_ref : [TB, CPAD]   log-probabilities (padded lanes sliced off outside)
    acc_ref : [TB, E] f32  running sum over the sequence
    """
    s = pl.program_id(1)

    @pl.when(s == 0)
    def _():
        acc_ref[...] = jnp.zeros_like(acc_ref)

    # Upcast right after load (v5e VPU has no bf16), accumulate in f32.
    h = h_ref[...].astype(jnp.float32)                    # [TB, TS, E]
    acc_ref[...] += jnp.sum(h, axis=1)                    # [TB, E]

    @pl.when(s == pl.num_programs(1) - 1)
    def _():
        # Scale folded into the epilogue with the GLOBAL sequence length.
        avg = acc_ref[...] * inv_seq_len                  # [TB, E]
        logits = jnp.dot(avg, w_ref[...],
                         preferred_element_type=jnp.float32)   # [TB, CPAD]
        logits = logits + b_ref[...]                      # padded lanes -> -1e30
        m = jnp.max(logits, axis=-1, keepdims=True)       # real lanes dominate
        shifted = logits - m
        lse = jnp.log(jnp.sum(jnp.exp(shifted), axis=-1, keepdims=True))
        out_ref[...] = (shifted - lse).astype(out_ref.dtype)


def discriminator_forward(hidden_states, w, b):
    """hidden_states: [B, S, E] (f32 or bf16); w: [E, C]; b: [C].

    Returns log-probabilities [B, C] (f32)."""
    B, S, E = hidden_states.shape
    C = w.shape[1]
    itemsize = jnp.dtype(hidden_states.dtype).itemsize

    tb, ts = _pick_tiles(B, S, E, itemsize)
    Bp = _round_up(B, tb)
    Sp = _round_up(S, ts)

    # Zero-pad batch/seq: zeros do not change the sum, and the mean divisor is
    # the global (unpadded) S, so the result is exact.
    if Bp != B or Sp != S:
        hidden_states = jnp.pad(
            hidden_states, ((0, Bp - B), (0, Sp - S), (0, 0)))

    # Lane-dense classifier: pad weight with zero columns, bias with -1e30 so
    # padded lanes never affect the log_softmax max / sum.
    w_p = jnp.zeros((E, _CPAD), jnp.float32).at[:, :C].set(
        w.astype(jnp.float32))
    b_p = jnp.full((1, _CPAD), _NEG_BIG, jnp.float32).at[0, :C].set(
        b.astype(jnp.float32))

    grid = (Bp // tb, Sp // ts)
    kernel = functools.partial(_discriminator_kernel, inv_seq_len=1.0 / S)

    out_padded = pl.pallas_call(
        kernel,
        out_shape=jax.ShapeDtypeStruct((Bp, _CPAD), jnp.float32),
        grid_spec=pltpu.PrefetchScalarGridSpec(
            num_scalar_prefetch=0,
            grid=grid,
            in_specs=[
                pl.BlockSpec((tb, ts, E), lambda bi, si: (bi, si, 0)),
                pl.BlockSpec((E, _CPAD), lambda bi, si: (0, 0)),
                pl.BlockSpec((1, _CPAD), lambda bi, si: (0, 0)),
            ],
            out_specs=pl.BlockSpec((tb, _CPAD), lambda bi, si: (bi, 0)),
            scratch_shapes=[pltpu.VMEM((tb, E), jnp.float32)],
        ),
        compiler_params=pltpu.CompilerParams(
            dimension_semantics=("parallel", "arbitrary"),
            vmem_limit_bytes=32 * 1024 * 1024,
        ),
    )(hidden_states, w_p, b_p)

    return out_padded[:B, :C]


def reference_forward(hidden_states, w, b):
    avg = jnp.mean(hidden_states.astype(jnp.float32), axis=1)
    logits = avg @ w.astype(jnp.float32) + b.astype(jnp.float32)
    return jax.nn.log_softmax(logits, axis=-1)


if __name__ == "__main__":
    # Small shapes consistent with the forward pass:
    #   batch=2, seq=8 (generated decoder steps), embed=32, class_size=4
    B, S, E, C = 2, 8, 32, 4

    key = jax.random.PRNGKey(0)
    k_h, k_w, k_b = jax.random.split(key, 3)

    # Synthetic decoder last-layer hidden states (stand-in for the Pegasus/T5
    # generate() output); deterministic classifier-head parameters.
    hidden = jax.random.normal(k_h, (B, S, E), dtype=jnp.float32)
    w = jax.random.normal(k_w, (E, C), dtype=jnp.float32) * 0.05
    b = jax.random.normal(k_b, (C,), dtype=jnp.float32) * 0.01

    out = discriminator_forward(hidden, w, b)
    out = jax.block_until_ready(out)

    ref = reference_forward(hidden, w, b)
    assert out.shape == (B, C)
    assert jnp.allclose(out, ref, atol=1e-5, rtol=1e-5), (out, ref)
    # log-probs should exponentiate to a distribution
    assert jnp.allclose(jnp.sum(jnp.exp(out), axis=-1), 1.0, atol=1e-5)

    # bf16 streaming path (halves HBM bytes on the mem-bound hidden read).
    out_bf16 = discriminator_forward(hidden.astype(jnp.bfloat16), w, b)
    out_bf16 = jax.block_until_ready(out_bf16)
    assert out_bf16.shape == (B, C)
    assert jnp.allclose(out_bf16, ref, atol=1e-1), (out_bf16, ref)

    # TODO(synk): the Pegasus/T5 `generate()` call producing decoder hidden
    # states has no Pallas equivalent and is replaced by a synthetic input.
    print("KERNEL_OK")
</pallas_src>

<mosaic_0001>
module attributes {stable_mosaic.version = 11 : i64} {
  func.func @_discriminator_kernel(%arg0: i32, %arg1: i32, %arg2: memref<8x8x32xf32, #tpu.memory_space<vmem>>, %arg3: memref<32x128xf32, #tpu.memory_space<vmem>>, %arg4: memref<1x128xf32, #tpu.memory_space<vmem>>, %arg5: memref<8x128xf32, #tpu.memory_space<vmem>>, %arg6: memref<8x32xf32, #tpu.memory_space<vmem>>) attributes {dimension_semantics = [#tpu.dimension_semantics<parallel>, #tpu.dimension_semantics<arbitrary>], iteration_bounds = array<i64: 1, 1>, scalar_prefetch = 0 : i64, scratch_operands = 1 : i64, tpu.core_type = #tpu.core_type<tc>, window_params = [{transform_indices = @transform_0, window_bounds = array<i64: 8, 8, 32>}, {pipeline_mode = #tpu.pipeline_mode<synchronous>, transform_indices = @transform_1, window_bounds = array<i64: 32, 128>}, {pipeline_mode = #tpu.pipeline_mode<synchronous>, transform_indices = @transform_2, window_bounds = array<i64: 1, 128>}, {transform_indices = @transform_3, window_bounds = array<i64: 8, 128>}]} {
    %c0_i32 = arith.constant 0 : i32
    %0 = arith.cmpi eq, %arg1, %c0_i32 : i32
    %1 = arith.extui %0 : i1 to i32
    %c0_i32_0 = arith.constant 0 : i32
    %2 = arith.cmpi ne, %1, %c0_i32_0 : i32
    scf.if %2 {
      %cst_9 = arith.constant 0.000000e+00 : f32
      %11 = vector.broadcast %cst_9 : f32 to vector<8x32xf32>
      %c0_10 = arith.constant 0 : index
      %c0_11 = arith.constant 0 : index
      %12 = vector.load %arg6[%c0_10, %c0_11] : memref<8x32xf32, #tpu.memory_space<vmem>>, vector<8x32xf32>
      tpu.vector_store %arg6[%c0_10, %c0_11], %11 {strides = array<i32>} : memref<8x32xf32, #tpu.memory_space<vmem>>, vector<8x32xf32>,
    } else {
    }
    %c0 = arith.constant 0 : index
    %c0_1 = arith.constant 0 : index
    %c0_2 = arith.constant 0 : index
    %3 = vector.load %arg2[%c0, %c0_1, %c0_2] : memref<8x8x32xf32, #tpu.memory_space<vmem>>, vector<8x8x32xf32>
    %c0_3 = arith.constant 0 : index
    %c0_4 = arith.constant 0 : index
    %4 = vector.load %arg6[%c0_3, %c0_4] : memref<8x32xf32, #tpu.memory_space<vmem>>, vector<8x32xf32>
    %cst = arith.constant dense<0.000000e+00> : vector<8x32xf32>
    %5 = vector.multi_reduction <add>, %3, %cst [1] : vector<8x8x32xf32> to vector<8x32xf32>
    %6 = arith.addf %4, %5 : vector<8x32xf32>
    %c0_5 = arith.constant 0 : index
    %c0_6 = arith.constant 0 : index
    %7 = vector.load %arg6[%c0_5, %c0_6] : memref<8x32xf32, #tpu.memory_space<vmem>>, vector<8x32xf32>
    tpu.vector_store %arg6[%c0_5, %c0_6], %6 {strides = array<i32>} : memref<8x32xf32, #tpu.memory_space<vmem>>, vector<8x32xf32>,
    %c0_i32_7 = arith.constant 0 : i32
    %8 = arith.cmpi eq, %arg1, %c0_i32_7 : i32
    %9 = arith.extui %8 : i1 to i32
    %c0_i32_8 = arith.constant 0 : i32
    %10 = arith.cmpi ne, %9, %c0_i32_8 : i32
    scf.if %10 {
      %c0_9 = arith.constant 0 : index
      %c0_10 = arith.constant 0 : index
      %11 = vector.load %arg6[%c0_9, %c0_10] : memref<8x32xf32, #tpu.memory_space<vmem>>, vector<8x32xf32>
      %cst_11 = arith.constant 1.250000e-01 : f32
      %12 = vector.broadcast %cst_11 : f32 to vector<8x32xf32>
      %13 = arith.mulf %11, %12 : vector<8x32xf32>
      %c0_12 = arith.constant 0 : index
      %c0_13 = arith.constant 0 : index
      %14 = vector.load %arg3[%c0_12, %c0_13] : memref<32x128xf32, #tpu.memory_space<vmem>>, vector<32x128xf32>
      %cst_14 = arith.constant dense<0.000000e+00> : vector<8x128xf32>
      %15 = tpu.matmul %13, %14, %cst_14 {dimension_numbers = #tpu.dot_dimension_numbers<[1], [0], [0], [1], [0, 0, 1, 1], [], []>} : vector<8x32xf32>, vector<32x128xf32>, vector<8x128xf32> -> vector<8x128xf32>
      %c0_15 = arith.constant 0 : index
      %c0_16 = arith.constant 0 : index
      %16 = vector.load %arg4[%c0_15, %c0_16] : memref<1x128xf32, #tpu.memory_space<vmem>>, vector<1x128xf32>
      %17 = vector.broadcast %16 : vector<1x128xf32> to vector<8x128xf32>
      %18 = arith.addf %15, %17 : vector<8x128xf32>
      %cst_17 = arith.constant dense<0xFF800000> : vector<8xf32>
      %19 = vector.multi_reduction <maximumf>, %18, %cst_17 [1] : vector<8x128xf32> to vector<8xf32>
      %20 = vector.shape_cast %19 : vector<8xf32> to vector<8x1xf32>
      %21 = vector.broadcast %20 : vector<8x1xf32> to vector<8x128xf32>
      %22 = arith.subf %18, %21 : vector<8x128xf32>
      %23 = math.exp %22 : vector<8x128xf32>
      %cst_18 = arith.constant dense<0.000000e+00> : vector<8xf32>
      %24 = vector.multi_reduction <add>, %23, %cst_18 [1] : vector<8x128xf32> to vector<8xf32>
      %25 = vector.shape_cast %24 : vector<8xf32> to vector<8x1xf32>
      %26 = math.log %25 : vector<8x1xf32>
      %27 = vector.broadcast %26 : vector<8x1xf32> to vector<8x128xf32>
      %28 = arith.subf %22, %27 : vector<8x128xf32>
      %c0_19 = arith.constant 0 : index
      %c0_20 = arith.constant 0 : index
      %29 = vector.load %arg5[%c0_19, %c0_20] : memref<8x128xf32, #tpu.memory_space<vmem>>, vector<8x128xf32>
      tpu.vector_store %arg5[%c0_19, %c0_20], %28 {strides = array<i32>} : memref<8x128xf32, #tpu.memory_space<vmem>>, vector<8x128xf32>,
    } else {
    }
    return
  }
  func.func @transform_0(%arg0: i32, %arg1: i32) -> (i32, i32, i32) {
    %c0_i32 = arith.constant 0 : i32
    %c0_i32_0 = arith.constant 0 : i32
    return %arg0, %arg1, %c0_i32 : i32, i32, i32
  }
  func.func @transform_1(%arg0: i32, %arg1: i32) -> (i32, i32) {
    %c0_i32 = arith.constant 0 : i32
    %c0_i32_0 = arith.constant 0 : i32
    %c0_i32_1 = arith.constant 0 : i32
    return %c0_i32, %c0_i32_0 : i32, i32
  }
  func.func @transform_2(%arg0: i32, %arg1: i32) -> (i32, i32) {
    %c0_i32 = arith.constant 0 : i32
    %c0_i32_0 = arith.constant 0 : i32
    %c0_i32_1 = arith.constant 0 : i32
    return %c0_i32, %c0_i32_0 : i32, i32
  }
  func.func @transform_3(%arg0: i32, %arg1: i32) -> (i32, i32) {
    %c0_i32 = arith.constant 0 : i32
    %c0_i32_0 = arith.constant 0 : i32
    return %arg0, %c0_i32 : i32, i32
  }
}

</mosaic_0001>

<llo_original>
// kernel: tpu_custom_call.1
$region0: #{tpu_custom_call.1}
  #allocation0 [shape = 'u32[]', space=smem, size = 0x4, offset = 0x4, fixed_abs, tag = 'smem constant byte address 0x4 - core index']
  #allocation1 [shape = 'u32[144,128]{1,0:T(1,128)}', space=vmem, size = 0x12000, scoped, tag = 'internal scratch']
  #allocation2 [shape = 'f32[8,32]{1,0:T(8,128)}', space=vmem, size = 0x1000, scoped, tag = 'scratch operand']
  %s0 = inlined_call_operand.hbm [shape: f32[8,8,32], index: 0, kind: input, shape index: {}]
  %s1 = inlined_call_operand.hbm [shape: f32[32,128], index: 1, kind: input, shape index: {}]
  %s2 = inlined_call_operand.vmem [shape: f32[1,128], index: 2, kind: input, shape index: {}]
  %s3 = inlined_call_operand.hbm [shape: f32[8,128], index: 3, kind: output, shape index: {}]
  %s4 = sld [smem:[#allocation0]]
  $region38: #{tpu_custom_call.1} parent=0
    _
  %s6 = ssub.s32 1, %s4
  %s7 = scalar_select 0, %s6, %s4
  $region1: #{tpu_custom_call.1} parent=0
    #allocation3 [shape = 'u8[32768]{0}', space=vmem, size = 0x8000, scoped, tag = 'input window, operand 0, single buffered']
    #allocation4 [shape = 's32[1]{0}', space=sflag, size = 0x4, scoped, tag = 'scoped memory for tpu_custom_call.1']
    #allocation5 [shape = 's32[1]{0}', space=sflag, size = 0x4, scoped, tag = 'scoped memory for tpu_custom_call.1']
    #allocation6 [shape = 'u8[16384]{0}', space=vmem, size = 0x4000, scoped, tag = 'input window, operand 1, single buffered']
    #allocation7 [shape = 's32[1]{0}', space=sflag, size = 0x4, scoped, tag = 'scoped memory for tpu_custom_call.1']
    #allocation8 [shape = 'u8[4096]{0}', space=vmem, size = 0x1000, scoped, tag = 'output window, operand 0, single buffered']
    %8 = vsyncpa [#allocation4], 0
    %9 = vsyncpa [#allocation7], 0
    %10 = vsyncpa [#allocation5], 0
    // Predicated region
    $region2: #{tpu_custom_call.1} parent=1 // pred_check
      _
    $region3: #{tpu_custom_call.1} parent=1 // pred_check_branch
      %12 = sbr.rel (0) target = $region5
    $region4: #{tpu_custom_call.1} parent=1 // pred_region
      %s14 = ssub.s32 1024, 1024
      %15 = vsyncadd [#allocation4], %s14
      %s16 = sshll.u32 [#allocation3], 4
      %s17 = int_to_ptr.vmem [resolvable:$true] %s16
      %22 = dma.hbm_to_vmem [thread:$0]  %s0, 1024, %s17, [#allocation4], 128, 128, 8
    $region5: #{tpu_custom_call.1} parent=1 // pred_fallthru
      _
    // Predicated region
    $region6: #{tpu_custom_call.1} parent=1 // pred_check
      _
    $region7: #{tpu_custom_call.1} parent=1 // pred_check_branch
      %24 = sbr.rel (0) target = $region9
    $region8: #{tpu_custom_call.1} parent=1 // pred_region
      %s26 = ssub.s32 512, 512
      %27 = vsyncadd [#allocation7], %s26
      %s28 = sshll.u32 [#allocation6], 4
      %s29 = int_to_ptr.vmem [resolvable:$true] %s28
      %34 = dma.hbm_to_vmem [thread:$0]  %s1, 512, %s29, [#allocation7], 128, 128, 8
    $region9: #{tpu_custom_call.1} parent=1 // pred_fallthru
      _
    // Predicated region
    $region10: #{tpu_custom_call.1} parent=1 // pred_check
      _
    $region11: #{tpu_custom_call.1} parent=1 // pred_check_branch
      %36 = sbr.rel (0) target = $region13
    $region12: #{tpu_custom_call.1} parent=1 // pred_region
      _
    $region13: #{tpu_custom_call.1} parent=1 // pred_fallthru
      _
    // Predicated region
    $region14: #{tpu_custom_call.1} parent=1 // pred_check
      _
    $region15: #{tpu_custom_call.1} parent=1 // pred_check_branch
      %38 = sbr.rel (0) target = $region17
    $region16: #{tpu_custom_call.1} parent=1 // pred_region
      %39 = dma.done [#allocation4], 1024
    $region17: #{tpu_custom_call.1} parent=1 // pred_fallthru
      _
    // Predicated region
    $region18: #{tpu_custom_call.1} parent=1 // pred_check
      _
    $region19: #{tpu_custom_call.1} parent=1 // pred_check_branch
      %41 = sbr.rel (0) target = $region21
    $region20: #{tpu_custom_call.1} parent=1 // pred_region
      %42 = dma.done [#allocation7], 512
    $region21: #{tpu_custom_call.1} parent=1 // pred_fallthru
      _
    %p43 = scmp.eq.s32.totalorder 0, 0
    // Predicated region
    $region22: #{tpu_custom_call.1} parent=1 // pred_check
      %p44 = pneg %p43
    $region23: #{tpu_custom_call.1} parent=1 // pred_check_branch
      %46 = sbr.rel (%p44) target = $region25
    $region24: #{tpu_custom_call.1} parent=1 // pred_region
      %vm47 = vcmask 261120
      %48 = vst.msk [vmem:[#allocation2] sm:$0xff] %vm47, 0.0
    $region25: #{tpu_custom_call.1} parent=1 // pred_fallthru
      _
    %v49 = vld [vmem:[#allocation3] sm:$0xff]
    %v50 = vld [vmem:[#allocation3 + $0x8] sm:$0xff]
    %v51 = vld [vmem:[#allocation3 + $0x10] sm:$0xff]
    %v52 = vld [vmem:[#allocation3 + $0x18] sm:$0xff]
    %v53 = vld [vmem:[#allocation3 + $0x20] sm:$0xff]
    %v54 = vld [vmem:[#allocation3 + $0x28] sm:$0xff]
    %v55 = vld [vmem:[#allocation3 + $0x30] sm:$0xff]
    %v56 = vld [vmem:[#allocation3 + $0x38] sm:$0xff]
    %v57 = vld [vmem:[#allocation2] sm:$0xff]
    %vm58 = vcmask 261120
    %v59 = vsel %vm58, %v49, 0.0
    %v60 = vrot.slane %v59, 4
    %v61 = vadd.f32 %v59, %v60
    %v62 = vrot.slane %v61, 2
    %v63 = vadd.f32 %v61, %v62
    %v64 = vrot.slane %v63, 1
    %v65 = vadd.f32 %v63, %v64
    %v66 = vsel %vm58, %v50, 0.0
    %v67 = vrot.slane %v66, 4
    %v68 = vadd.f32 %v66, %v67
    %v69 = vrot.slane %v68, 2
    %v70 = vadd.f32 %v68, %v69
    %v71 = vrot.slane %v70, 1
    %v72 = vadd.f32 %v70, %v71
    %v73 = vsel %vm58, %v51, 0.0
    %v74 = vrot.slane %v73, 4
    %v75 = vadd.f32 %v73, %v74
    %v76 = vrot.slane %v75, 2
    %v77 = vadd.f32 %v75, %v76
    %v78 = vrot.slane %v77, 1
    %v79 = vadd.f32 %v77, %v78
    %v80 = vsel %vm58, %v52, 0.0
    %v81 = vrot.slane %v80, 4
    %v82 = vadd.f32 %v80, %v81
    %v83 = vrot.slane %v82, 2
    %v84 = vadd.f32 %v82, %v83
    %v85 = vrot.slane %v84, 1
    %v86 = vadd.f32 %v84, %v85
    %v87 = vsel %vm58, %v53, 0.0
    %v88 = vrot.slane %v87, 4
    %v89 = vadd.f32 %v87, %v88
    %v90 = vrot.slane %v89, 2
    %v91 = vadd.f32 %v89, %v90
    %v92 = vrot.slane %v91, 1
    %v93 = vadd.f32 %v91, %v92
    %v94 = vsel %vm58, %v54, 0.0
    %v95 = vrot.slane %v94, 4
    %v96 = vadd.f32 %v94, %v95
    %v97 = vrot.slane %v96, 2
    %v98 = vadd.f32 %v96, %v97
    %v99 = vrot.slane %v98, 1
    %v100 = vadd.f32 %v98, %v99
    %v101 = vsel %vm58, %v55, 0.0
    %v102 = vrot.slane %v101, 4
    %v103 = vadd.f32 %v101, %v102
    %v104 = vrot.slane %v103, 2
    %v105 = vadd.f32 %v103, %v104
    %v106 = vrot.slane %v105, 1
    %v107 = vadd.f32 %v105, %v106
    %v108 = vsel %vm58, %v56, 0.0
    %v109 = vrot.slane %v108, 4
    %v110 = vadd.f32 %v108, %v109
    %v111 = vrot.slane %v110, 2
    %v112 = vadd.f32 %v110, %v111
    %v113 = vrot.slane %v112, 1
    %v114 = vadd.f32 %v112, %v113
    %vm123 = vcmask 1041409
    %v124 = vsel %vm123, %v72, %v65
    %vm125 = vcmask 1042434
    %v126 = vsel %vm125, %v79, %v124
    %vm127 = vcmask 1043459
    %v128 = vsel %vm127, %v86, %v126
    %vm129 = vcmask 1044484
    %v130 = vsel %vm129, %v93, %v128
    %vm131 = vcmask 1045509
    %v132 = vsel %vm131, %v100, %v130
    %vm133 = vcmask 1046534
    %v134 = vsel %vm133, %v107, %v132
    %vm135 = vcmask 1047559
    %v136 = vsel %vm135, %v114, %v134
    %v138 = vadd.f32 %v57, %v136
    %139 = vst.msk [vmem:[#allocation2] sm:$0xff] %vm58, %v138
    // Predicated region
    $region26: #{tpu_custom_call.1} parent=1 // pred_check
      %p140 = pneg %p43
    $region27: #{tpu_custom_call.1} parent=1 // pred_check_branch
      %142 = sbr.rel (%p140) target = $region29
    $region28: #{tpu_custom_call.1} parent=1 // pred_region
      %v143 = vld [vmem:[#allocation2] sm:$0xff]
      %v144 = vmul.f32 %v143, 0.125
      %v145 = vld [vmem:[#allocation6] sm:$0xff]
      %v146 = vld [vmem:[#allocation6 + $0x8] sm:$0xff]
      %v147 = vld [vmem:[#allocation6 + $0x10] sm:$0xff]
      %v148 = vld [vmem:[#allocation6 + $0x18] sm:$0xff]
      %v149 = vld [vmem:[%s2] sm:$0x1]
      %v151 = vlaneseq
      %v152 = vshrl.u32 %v151, 7
      %v153 = vsub.s32 0, %v152
      %v154 = vrot.slane %v149, %v153
      %v157 = vsel %vm58, %v144, 0
      %159 = vmatprep.subr.mxu0 0.0
      %160 = vmatpush1.msra.mxu0 %v145
      %161 = vmatprep.subr.mxu0 0.0
      %162 = vmatpush1.msra.mxu0 %v146
      %163 = vmatprep.subr.mxu0 0.0
      %164 = vmatpush1.msra.mxu0 %v147
      %165 = vmatprep.subr.mxu0 0.0
      %166 = vmatpush1.msra.mxu0 %v148
      %167 = vmatprep.subr.mxu0 0.0
      %168 = vmatpush1.msra.mxu0 0.0
      %169 = vmatprep.subr.mxu0 0.0
      %170 = vmatpush1.msra.mxu0 0.0
      %171 = vmatprep.subr.mxu0 0.0
      %172 = vmatpush1.msra.mxu0 0.0
      %173 = vmatprep.subr.mxu0 0.0
      %174 = vmatpush1.msra.mxu0 0.0
      %175 = vmatprep.subr.mxu0 0.0
      %176 = vmatpush1.msra.mxu0 0.0
      %177 = vmatprep.subr.mxu0 0.0
      %178 = vmatpush1.msra.mxu0 0.0
      %179 = vmatprep.subr.mxu0 0.0
      %180 = vmatpush1.msra.mxu0 0.0
      %181 = vmatprep.subr.mxu0 0.0
      %182 = vmatpush1.msra.mxu0 0.0
      %183 = vmatprep.subr.mxu0 0.0
      %184 = vmatpush1.msra.mxu0 0.0
      %185 = vmatprep.subr.mxu0 0.0
      %186 = vmatpush1.msra.mxu0 0.0
      %187 = vmatprep.subr.mxu0 0.0
      %188 = vmatpush1.msra.mxu0 0.0
      %189 = vmatprep.subr.mxu0 0.0
      %190 = vmatpush1.msra.mxu0 0.0
      %191 = vmatprep.subr.mxu0 0.0
      %192 = vmatpush1.msra.mxu0 0.0
      %193 = vmatprep.subr.mxu0 0.0
      %194 = vmatpush1.msra.mxu0 0.0
      %195 = vmatprep.subr.mxu0 0.0
      %196 = vmatpush1.msra.mxu0 0.0
      %197 = vmatprep.subr.mxu0 0.0
      %198 = vmatpush1.msra.mxu0 0.0
      %199 = vmatprep.subr.mxu0 0.0
      %200 = vmatpush1.msra.mxu0 0.0
      %201 = vmatprep.subr.mxu0 0.0
      %202 = vmatpush1.msra.mxu0 0.0
      %203 = vmatprep.subr.mxu0 0.0
      %204 = vmatpush1.msra.mxu0 0.0
      %205 = vmatprep.subr.mxu0 0.0
      %206 = vmatpush1.msra.mxu0 0.0
      %207 = vmatprep.subr.mxu0 0.0
      %208 = vmatpush1.msra.mxu0 0.0
      %209 = vmatprep.subr.mxu0 0.0
      %210 = vmatpush1.msra.mxu0 0.0
      %211 = vmatprep.subr.mxu0 0.0
      %212 = vmatpush1.msra.mxu0 0.0
      %213 = vmatprep.subr.mxu0 0.0
      %214 = vmatpush1.msra.mxu0 0.0
      %215 = vmatprep.subr.mxu0 0.0
      %216 = vmatpush1.msra.mxu0 0.0
      %217 = vmatprep.subr.mxu0 0.0
      %218 = vmatpush1.msra.mxu0 0.0
      %219 = vmatprep.subr.mxu0 0.0
      %220 = vmatpush1.msra.mxu0 0.0
      %221 = vmatprep.subr.mxu0 0.0
      %222 = vmatpush1.msra.mxu0 0.0
      %223 = vmatprep.mubr.f32.mxu0 0.0
      %224 = vmatmul.mubr.f32.gmra.mrb[0].mxu0 %v157
      %v225 = vpop.f32.mrb[0].mxu0
      %v226 = vadd.f32 %v154, %v225
      %v227 = vpop.f32.mrb[0].mxu0
      %228 = vdwg.mxu0
      %229 = vmax.xlane.f32.xlu0 %v226
      %v230 = vpop.xlane.xlu0 %229
      %v231 = vsub.f32 %v226, %v230
      %v232 = vmul.f32 %v231, 1.442695
      %v233 = vpow.pop %v232
      %234 = vadd.xlane.f32.xlu0 %v233
      %v235 = vpop.xlane.xlu0 %234
      %v236 = vlog2.pop %v235
      %v237 = vmul.f32 %v236, 0.6931472
      %v238 = vsub.f32 %v231, %v237
      %239 = vst [vmem:[#allocation8] sm:$0xff] %v238
    $region29: #{tpu_custom_call.1} parent=1 // pred_fallthru
      _
    // Predicated region
    $region30: #{tpu_custom_call.1} parent=1 // pred_check
      _
    $region31: #{tpu_custom_call.1} parent=1 // pred_check_branch
      %241 = sbr.rel (0) target = $region33
    $region32: #{tpu_custom_call.1} parent=1 // pred_region
      %s243 = ssub.s32 128, 128
      %244 = vsyncadd [#allocation5], %s243
      %s246 = sshll.u32 [#allocation8], 4
      %s247 = int_to_ptr.vmem [resolvable:$true] %s246
      %249 = dma.vmem_to_hbm [thread:$0]  %s247, 128, %s3, [#allocation5]
    $region33: #{tpu_custom_call.1} parent=1 // pred_fallthru
      _
    // Predicated region
    $region34: #{tpu_custom_call.1} parent=1 // pred_check
      _
    $region35: #{tpu_custom_call.1} parent=1 // pred_check_branch
      %251 = sbr.rel (0) target = $region37
    $region36: #{tpu_custom_call.1} parent=1 // pred_region
      %252 = dma.done [#allocation5], 128
    $region37: #{tpu_custom_call.1} parent=1 // pred_fallthru
      _
    %253 = vsyncpa [#allocation4], 1
    %254 = vsyncpa [#allocation7], 1
    %255 = vsyncpa [#allocation5], 1

</llo_original>
